<compile_context>
chip_gen: v6e
topology: v6e:2x2x1
jax: 0.10.0
libtpu: 0.0.40
codegen_flags: <defaults>
</compile_context>

<pallas_src>
from functools import partial

import jax
import jax.numpy as jnp
from jax.experimental import pallas as pl
from jax.experimental.pallas import tpu as pltpu


# ----------------------------------------------------------------------------
# Per-step kernel: SMEM scalars, aliased state, two outputs.
# ----------------------------------------------------------------------------
def _scalar_update_kernel(x_ref, total_ref, count_ref, new_total_ref, new_count_ref):
    """One forward step. All refs are (1,) f32 in SMEM (scalar path)."""
    x = x_ref[0]
    total = total_ref[0]
    count = count_ref[0]

    # Always write the outputs: the HBM buffers are aliased in place, but the
    # output SMEM windows are distinct from the input windows, so they must be
    # populated on every path.
    new_total_ref[0] = total
    new_count_ref[0] = count

    @pl.when(x != 0.0)          # PyTorch: `if not scalar.eq(0.0):`
    def _():
        new_total_ref[0] = total + x
        new_count_ref[0] = count + 1.0


_SMEM = pl.BlockSpec(memory_space=pltpu.SMEM)
_VMEM = pl.BlockSpec(memory_space=pltpu.VMEM)


def _update_call(x, total, count):
    return pl.pallas_call(
        _scalar_update_kernel,
        out_shape=(
            jax.ShapeDtypeStruct((1,), jnp.float32),   # new_total (aliases total)
            jax.ShapeDtypeStruct((1,), jnp.float32),   # new_count (aliases count)
        ),
        in_specs=[_SMEM, _SMEM, _SMEM],
        out_specs=(_SMEM, _SMEM),
        input_output_aliases={1: 0, 2: 1},             # total->new_total, count->new_count
    )(x, total, count)


@partial(jax.jit, donate_argnums=(1, 2))
def _scalar_step(scalar, total, count):
    """Fused step: reshape-in-jit, in-place buffer update, value = total/count."""
    x = jnp.asarray(scalar, jnp.float32).reshape(1)
    new_total, new_count = _update_call(x, total, count)
    value = new_total / new_count                      # 0/0 -> nan, like torch
    return new_total, new_count, value


# ----------------------------------------------------------------------------
# Batched kernel: fold a whole (1, N) stream in one call (amortizes dispatch).
# ----------------------------------------------------------------------------
def _scalar_fold_kernel(xs_ref, sum_ref, cnt_ref):
    xs = xs_ref[...]                                   # (1, N) f32, VMEM
    sum_ref[...] = jnp.sum(xs, axis=1, keepdims=True)  # zeros contribute nothing
    cnt_ref[...] = jnp.sum((xs != 0.0).astype(jnp.float32), axis=1, keepdims=True)


@partial(jax.jit, donate_argnums=(1, 2))
def _scalar_batch_step(xs, total, count):
    xs = jnp.asarray(xs, jnp.float32).reshape(1, -1)
    s, c = pl.pallas_call(
        _scalar_fold_kernel,
        out_shape=(
            jax.ShapeDtypeStruct((1, 1), jnp.float32),
            jax.ShapeDtypeStruct((1, 1), jnp.float32),
        ),
        in_specs=[_VMEM],
        out_specs=(_VMEM, _VMEM),
    )(xs)
    new_total = total + s.reshape(1)
    new_count = count + c.reshape(1)
    return new_total, new_count, new_total / new_count


# ----------------------------------------------------------------------------
# Module wrapper.
# ----------------------------------------------------------------------------
class Scalar:
    """JAX/Pallas port of torchplus.metrics.Scalar (forward pass only)."""

    def __init__(self):
        self.total = jnp.zeros((1,), jnp.float32)
        self.count = jnp.zeros((1,), jnp.float32)

    def __call__(self, scalar):
        self.total, self.count, value = _scalar_step(scalar, self.total, self.count)
        return value                                   # device array; caller syncs

    def update_batch(self, scalars):
        """Fold a whole stream of scalars with a single kernel launch."""
        self.total, self.count, value = _scalar_batch_step(scalars, self.total, self.count)
        return value

    @property
    def value(self):
        return self.total / self.count

    def clear(self):
        self.total = jnp.zeros((1,), jnp.float32)
        self.count = jnp.zeros((1,), jnp.float32)


if __name__ == "__main__":
    key = jax.random.PRNGKey(0)
    raw = jax.random.normal(key, (4,), jnp.float32)
    # Deterministic stream mixing zero and non-zero scalars: the leading zero
    # exercises the skip branch while count == 0 (value = nan, like PyTorch),
    # the later zero exercises it mid-stream.
    stream = [0.0, float(raw[0]), float(raw[1]), 0.0, float(raw[2]), float(raw[3])]

    # --- online (per-step) path: one SMEM-scalar pallas_call per scalar ------
    metric = Scalar()
    values = [metric(s) for s in stream]     # no per-step host sync
    values = jax.block_until_ready(values)   # single sync for the whole stream

    # Pure-Python reference of the PyTorch forward pass.
    ref_total, ref_count, ref_values = 0.0, 0.0, []
    for s in stream:
        if s != 0.0:
            ref_count += 1.0
            ref_total += s
        ref_values.append(ref_total / ref_count if ref_count > 0.0 else float("nan"))

    for got, want in zip(values, ref_values):
        g = float(got[0])
        if want != want:                     # expected nan
            assert g != g, (g, want)
        else:
            assert abs(g - want) < 1e-5, (g, want)

    assert abs(float(metric.total[0]) - ref_total) < 1e-5, (metric.total, ref_total)
    assert abs(float(metric.count[0]) - ref_count) < 1e-6, (metric.count, ref_count)
    val = jax.block_until_ready(metric.value)
    assert abs(float(val[0]) - ref_total / ref_count) < 1e-5, val

    # --- batched path: fold the whole stream in one pallas_call --------------
    batched = Scalar()
    bval = jax.block_until_ready(batched.update_batch(jnp.asarray(stream, jnp.float32)))
    assert abs(float(bval[0]) - ref_values[-1]) < 1e-5, (bval, ref_values[-1])
    assert abs(float(batched.total[0]) - ref_total) < 1e-5, (batched.total, ref_total)
    assert abs(float(batched.count[0]) - ref_count) < 1e-6, (batched.count, ref_count)

    print("KERNEL_OK")
</pallas_src>

<mosaic_0001>
module attributes {stable_mosaic.version = 11 : i64} {
  func.func @_scalar_update_kernel(%arg0: memref<1xf32, #tpu.memory_space<smem>>, %arg1: memref<1xf32, #tpu.memory_space<smem>>, %arg2: memref<1xf32, #tpu.memory_space<smem>>, %arg3: memref<1xf32, #tpu.memory_space<smem>>, %arg4: memref<1xf32, #tpu.memory_space<smem>>) attributes {dimension_semantics = [], scalar_prefetch = 0 : i64, scratch_operands = 0 : i64, tpu.core_type = #tpu.core_type<tc>} {
    %c0 = arith.constant 0 : index
    %0 = memref.load %arg0[%c0] : memref<1xf32, #tpu.memory_space<smem>>
    %c0_0 = arith.constant 0 : index
    %1 = memref.load %arg1[%c0_0] : memref<1xf32, #tpu.memory_space<smem>>
    %c0_1 = arith.constant 0 : index
    %2 = memref.load %arg2[%c0_1] : memref<1xf32, #tpu.memory_space<smem>>
    %c0_2 = arith.constant 0 : index
    %3 = memref.load %arg3[%c0_2] : memref<1xf32, #tpu.memory_space<smem>>
    memref.store %1, %arg3[%c0_2] : memref<1xf32, #tpu.memory_space<smem>>
    %c0_3 = arith.constant 0 : index
    %4 = memref.load %arg4[%c0_3] : memref<1xf32, #tpu.memory_space<smem>>
    memref.store %2, %arg4[%c0_3] : memref<1xf32, #tpu.memory_space<smem>>
    %cst = arith.constant 0.000000e+00 : f32
    %5 = arith.cmpf one, %0, %cst : f32
    %6 = arith.extui %5 : i1 to i32
    %c0_i32 = arith.constant 0 : i32
    %7 = arith.cmpi ne, %6, %c0_i32 : i32
    scf.if %7 {
      %8 = arith.addf %1, %0 : f32
      %c0_4 = arith.constant 0 : index
      %9 = memref.load %arg3[%c0_4] : memref<1xf32, #tpu.memory_space<smem>>
      memref.store %8, %arg3[%c0_4] : memref<1xf32, #tpu.memory_space<smem>>
      %cst_5 = arith.constant 1.000000e+00 : f32
      %10 = arith.addf %2, %cst_5 : f32
      %c0_6 = arith.constant 0 : index
      %11 = memref.load %arg4[%c0_6] : memref<1xf32, #tpu.memory_space<smem>>
      memref.store %10, %arg4[%c0_6] : memref<1xf32, #tpu.memory_space<smem>>
    } else {
    }
    return
  }
}

</mosaic_0001>

<llo_original>
// kernel: _scalar_step.1
$region0: #{_scalar_step.1}
  #allocation0 [shape = 'u32[]', space=smem, size = 0x4, offset = 0x4, fixed_abs, tag = 'smem constant byte address 0x4 - core index']
  #allocation1 [shape = 'u32[144,128]{1,0:T(1,128)}', space=vmem, size = 0x12000, scoped, tag = 'internal scratch']
  #allocation2 [shape = 'f32[1]{0:T(128)S(6)}', space=smem, size = 0x200, scoped, tag = 'scoped memory for _scalar_step.1']
  #allocation3 [shape = 'f32[1]{0:T(128)S(6)}', space=smem, size = 0x200, scoped, tag = 'scoped memory for _scalar_step.1']
  #allocation4 [shape = 'f32[1]{0:T(128)S(6)}', space=smem, size = 0x200, scoped, tag = 'scoped memory for _scalar_step.1']
  %s0 = inlined_call_operand.<no memory space> [shape: f32[1], index: 0, kind: input, shape index: {}]
  %s1 = inlined_call_operand.<no memory space> [shape: f32[1], index: 1, kind: input, shape index: {}, may-alias: {1,3}]
  %s2 = inlined_call_operand.<no memory space> [shape: f32[1], index: 2, kind: input, shape index: {}, may-alias: {2,4}]
  %s3 = inlined_call_operand.hbm [shape: f32[1], index: 3, kind: output, shape index: {0}, may-alias: {1,3}]
  %s4 = inlined_call_operand.hbm [shape: f32[1], index: 4, kind: output, shape index: {1}, may-alias: {2,4}]
  %5 = xla_tuple %s3, %s4
  %s6 = sld [smem:[#allocation0]]
  $region34: #{_scalar_step.1} parent=0
    _
  %s8 = ssub.s32 1, %s6
  %s9 = scalar_select 0, %s8, %s6
  %10 = sst [smem:[#allocation2]] %s0
  %11 = sst [smem:[#allocation3]] %s1
  %12 = sst [smem:[#allocation4]] %s2
  $region1: #{_scalar_step.1} parent=0
    #allocation5 [shape = 'u8[512]{0}', space=smem, size = 0x200, scoped, tag = 'output window, operand 0, single buffered']
    #allocation6 [shape = 's32[1]{0}', space=sflag, size = 0x4, scoped, tag = 'scoped memory for _scalar_step.1']
    #allocation7 [shape = 'u8[512]{0}', space=smem, size = 0x200, scoped, tag = 'output window, operand 1, single buffered']
    #allocation8 [shape = 's32[1]{0}', space=sflag, size = 0x4, scoped, tag = 'scoped memory for _scalar_step.1']
    %13 = vsyncpa [#allocation6], 0
    %14 = vsyncpa [#allocation8], 0
    // Predicated region
    $region2: #{_scalar_step.1} parent=1 // pred_check
      _
    $region3: #{_scalar_step.1} parent=1 // pred_check_branch
      %16 = sbr.rel (0) target = $region5
    $region4: #{_scalar_step.1} parent=1 // pred_region
      _
    $region5: #{_scalar_step.1} parent=1 // pred_fallthru
      _
    // Predicated region
    $region6: #{_scalar_step.1} parent=1 // pred_check
      _
    $region7: #{_scalar_step.1} parent=1 // pred_check_branch
      %18 = sbr.rel (0) target = $region9
    $region8: #{_scalar_step.1} parent=1 // pred_region
      _
    $region9: #{_scalar_step.1} parent=1 // pred_fallthru
      _
    // Predicated region
    $region10: #{_scalar_step.1} parent=1 // pred_check
      _
    $region11: #{_scalar_step.1} parent=1 // pred_check_branch
      %20 = sbr.rel (0) target = $region13
    $region12: #{_scalar_step.1} parent=1 // pred_region
      _
    $region13: #{_scalar_step.1} parent=1 // pred_fallthru
      _
    %s21 = sld [smem:[#allocation2]]
    %s22 = sld [smem:[#allocation3]]
    %s23 = sld [smem:[#allocation4]]
    %s24 = scalar_lea.smem [#allocation5], 0
    %25 = sst [smem:[%s24]] %s22
    %s26 = scalar_lea.smem [#allocation7], 0
    %27 = sst [smem:[%s26]] %s23
    %p28 = scmp.ne.f32.partialorder %s21, 0.0
    // Predicated region
    $region14: #{_scalar_step.1} parent=1 // pred_check
      %p29 = pneg %p28
    $region15: #{_scalar_step.1} parent=1 // pred_check_branch
      %31 = sbr.rel (%p29) target = $region17
    $region16: #{_scalar_step.1} parent=1 // pred_region
      %s32 = sadd.f32 %s22, %s21
      %33 = sst [smem:[%s24]] %s32
      %s34 = sadd.f32 %s23, 1.0
      %35 = sst [smem:[%s26]] %s34
    $region17: #{_scalar_step.1} parent=1 // pred_fallthru
      _
    // Predicated region
    $region18: #{_scalar_step.1} parent=1 // pred_check
      _
    $region19: #{_scalar_step.1} parent=1 // pred_check_branch
      %37 = sbr.rel (0) target = $region21
    $region20: #{_scalar_step.1} parent=1 // pred_region
      %s39 = ssub.s32 16, 16
      %40 = vsyncadd [#allocation6], %s39
      %43 = dma.smem_to_hbm [#allocation5], 16, %s3, [#allocation6]
    $region21: #{_scalar_step.1} parent=1 // pred_fallthru
      _
    // Predicated region
    $region22: #{_scalar_step.1} parent=1 // pred_check
      _
    $region23: #{_scalar_step.1} parent=1 // pred_check_branch
      %45 = sbr.rel (0) target = $region25
    $region24: #{_scalar_step.1} parent=1 // pred_region
      %s47 = ssub.s32 16, 16
      %48 = vsyncadd [#allocation8], %s47
      %51 = dma.smem_to_hbm [#allocation7], 16, %s4, [#allocation8]
    $region25: #{_scalar_step.1} parent=1 // pred_fallthru
      _
    // Predicated region
    $region26: #{_scalar_step.1} parent=1 // pred_check
      _
    $region27: #{_scalar_step.1} parent=1 // pred_check_branch
      %53 = sbr.rel (0) target = $region29
    $region28: #{_scalar_step.1} parent=1 // pred_region
      %54 = dma.done [#allocation6], 16
    $region29: #{_scalar_step.1} parent=1 // pred_fallthru
      _
    // Predicated region
    $region30: #{_scalar_step.1} parent=1 // pred_check
      _
    $region31: #{_scalar_step.1} parent=1 // pred_check_branch
      %56 = sbr.rel (0) target = $region33
    $region32: #{_scalar_step.1} parent=1 // pred_region
      %57 = dma.done [#allocation8], 16
    $region33: #{_scalar_step.1} parent=1 // pred_fallthru
      _
    %58 = sfence
    %59 = vsyncpa [#allocation6], 1
    %60 = vsyncpa [#allocation8], 1

</llo_original>
